<compile_context>
chip_gen: v5e
topology: v5e:2x2
jax: 0.10.0
libtpu: 0.0.40
codegen_flags: <defaults>
</compile_context>

<pallas_src>
import jax
import jax.numpy as jnp
from jax.experimental import pallas as pl
from jax.experimental.pallas import tpu as pltpu


def _round_up(x, m):
    return (x + m - 1) // m * m


def _vmem_capacity_bytes():
    """Physical VMEM per TensorCore (64 MiB on v7x, 128 MiB on v5e/v6e)."""
    try:
        return int(pltpu.get_tpu_info().vmem_capacity_bytes)
    except Exception:
        return 64 * 1024 * 1024  # conservative fallback (v7x per-TC)


def _row_alignment(dtype):
    """Packed sublane tile: 8 rows for 32-bit, 16 for 16-bit, 32 for 8-bit dtypes."""
    return max(8, 32 // jnp.dtype(dtype).itemsize)


def _choose_block_rows(n, bytes_per_row, tile_budget_bytes, row_align):
    """Pick block_rows from the VMEM budget (targeting <=1024 rows, ~85% of the HBM
    roofline per the tile sweep), while guaranteeing some grid depth (up to 8 steps)
    whenever the batch allows it so the batch axis pipelines and shards across both
    v7x TensorCores.  block_rows need NOT divide n: the ragged tail is masked."""
    cap = max(row_align, tile_budget_bytes // max(bytes_per_row, 1))
    cap = min(cap, 1024)
    if n > row_align:  # give the grid some depth when the batch allows it
        depth = min(8, pl.cdiv(n, row_align))
        cap = min(cap, _round_up(pl.cdiv(n, depth), row_align))
    cap = max(row_align, (cap // row_align) * row_align)
    return min(cap, _round_up(n, row_align))


def _make_mlp_kernel(num_layers):
    """Fused (Linear -> ReLU) x (num_layers-1) -> Linear; all intermediates stay in
    VMEM/vregs.  Matmuls run on the MXU in the weights' dtype (bf16 by default) with
    f32 accumulation; bias-add / ReLU stay f32; only the final store down-casts."""

    def kernel(x_ref, *refs):
        o_ref = refs[-1]
        param_refs = refs[:-1]
        y = x_ref[...]
        for l in range(num_layers):
            w_ref = param_refs[2 * l]
            b_ref = param_refs[2 * l + 1]
            y = jnp.dot(y.astype(w_ref.dtype), w_ref[...],
                        preferred_element_type=jnp.float32) + b_ref[...]
            if l < num_layers - 1:
                y = jnp.maximum(y, 0.0)
        o_ref[...] = y.astype(o_ref.dtype)

    return kernel


def prepare_mlp_readout_params(params, compute_dtype=jnp.bfloat16):
    """One-time parameter preparation (call once, OUTSIDE the hot loop).

    params: [(W0, b0), ..., (WL, bL)] with W_l of shape (out_l, in_l) (nn.Linear layout).
    Weights are transposed to (in, out) so the kernel computes x @ W + b directly on the
    MXU, and cast to `compute_dtype` (bf16 default: MXU-native, half the DMA bytes).
    Biases stay f32 (1, out) rows since the accumulator is f32.  No output padding:
    the kernel writes the true d_out columns (lane padding for tiny d_out costs far
    more HBM traffic than the masked stores it avoids)."""
    prepared = []
    for w, b in params:
        prepared.append(jnp.asarray(w.T, compute_dtype))
        prepared.append(jnp.asarray(b, jnp.float32).reshape(1, -1))
    return tuple(prepared)


def mlp_readout_pallas(x, prepared_params, *, block_rows=None, interpret=False):
    """Run the fused MLP readout.  `prepared_params` comes from
    prepare_mlp_readout_params()."""
    orig_shape = x.shape
    if x.ndim != 2:  # nn.Linear semantics: act over the last dim
        x = x.reshape(-1, orig_shape[-1])
    n, d_in = x.shape

    num_layers = len(prepared_params) // 2
    weights = prepared_params[0::2]
    assert weights[0].shape[0] == d_in, "input feature dim mismatch"
    d_out = weights[-1].shape[1]
    layer_widths = [w.shape[1] for w in weights]
    compute_dtype = weights[0].dtype

    x_itemsize = jnp.dtype(x.dtype).itemsize
    c_itemsize = jnp.dtype(compute_dtype).itemsize

    # Peak per-row live set: double-buffered x / out tiles + compute-dtype cast copies
    # + f32 accumulators/activations for every layer.
    bytes_per_row = (
        2 * d_in * x_itemsize
        + 2 * d_out * x_itemsize
        + d_in * c_itemsize
        + sum(layer_widths) * 4
        + sum(layer_widths[:-1]) * c_itemsize
    )
    weight_bytes = sum(int(a.size) * jnp.dtype(a.dtype).itemsize for a in prepared_params)

    vmem_cap = _vmem_capacity_bytes()
    # Per-tile budget: ~1/4 of physical VMEM (16 MiB on v7x, 32 MiB on v5e/v6e), minus
    # the resident weights (conservatively counted double-buffered).
    tile_budget = max(vmem_cap // 4 - 2 * weight_bytes, 64 * 1024)

    row_align = max(_row_alignment(x.dtype), _row_alignment(compute_dtype))
    if block_rows is None:
        block_rows = _choose_block_rows(n, bytes_per_row, tile_budget, row_align)
    else:
        assert block_rows % 8 == 0 or block_rows >= n, (
            "block_rows must be a multiple of 8 or cover the whole batch")
    grid = (pl.cdiv(n, block_rows),)

    vmem_estimate = block_rows * bytes_per_row + 2 * weight_bytes
    compiler_kwargs = dict(dimension_semantics=("parallel",))
    if vmem_estimate > 16 * 1024 * 1024:  # above the smallest scoped default -> be explicit
        compiler_kwargs["vmem_limit_bytes"] = int(
            min(max(2 * vmem_estimate, 32 * 1024 * 1024), 3 * vmem_cap // 4))

    x_spec = pl.BlockSpec((block_rows, d_in), lambda i: (i, 0))
    out_spec = pl.BlockSpec((block_rows, d_out), lambda i: (i, 0))
    out_shape = jax.ShapeDtypeStruct((n, d_out), x.dtype)
    kernel = _make_mlp_kernel(num_layers)

    def build(single_buffer_weights):
        if single_buffer_weights:
            # Constant index_map -> a single resident VMEM buffer is enough.
            def param_spec(a):
                return pl.BlockSpec(a.shape, lambda i: (0, 0),
                                    pipeline_mode=pl.Buffered(1))
        else:
            def param_spec(a):
                return pl.BlockSpec(a.shape, lambda i: (0, 0))
        return pl.pallas_call(
            kernel,
            out_shape=out_shape,
            grid=grid,
            in_specs=[x_spec] + [param_spec(a) for a in prepared_params],
            out_specs=out_spec,
            compiler_params=pltpu.CompilerParams(**compiler_kwargs),
            interpret=interpret,
        )

    try:
        out = build(single_buffer_weights=True)(x, *prepared_params)
    except Exception:
        # Older JAX without BlockSpec.pipeline_mode / Buffered(1): fall back to the
        # default double-buffered weight blocks (tiny extra VMEM for these sizes).
        out = build(single_buffer_weights=False)(x, *prepared_params)

    if len(orig_shape) != 2:
        out = out.reshape(orig_shape[:-1] + (d_out,))
    return out


def init_mlp_readout_params(key, input_dim, output_dim, L=2):
    """Deterministic init matching PyTorch nn.Linear default:
    U(-1/sqrt(fan_in), 1/sqrt(fan_in)) for both weight and bias."""
    dims = [input_dim // (2 ** l) for l in range(L + 1)] + [output_dim]
    params = []
    for l in range(L + 1):
        fan_in, fan_out = dims[l], dims[l + 1]
        key, kw, kb = jax.random.split(key, 3)
        bound = 1.0 / jnp.sqrt(fan_in)
        w = jax.random.uniform(kw, (fan_out, fan_in), jnp.float32, -bound, bound)
        b = jax.random.uniform(kb, (fan_out,), jnp.float32, -bound, bound)
        params.append((w, b))
    return params


def mlp_readout_ref(x, params):
    """Pure-JAX reference mirroring the PyTorch forward (high-precision matmuls)."""
    y = x
    for l, (w, b) in enumerate(params):
        y = jnp.dot(y, w.T, precision="highest") + b
        if l < len(params) - 1:
            y = jnp.maximum(y, 0.0)
    return y


if __name__ == "__main__":
    key = jax.random.PRNGKey(0)
    input_dim, output_dim, L = 32, 8, 2  # hidden dims: 16, 8
    kx, kx2, kp = jax.random.split(key, 3)
    params = init_mlp_readout_params(kp, input_dim, output_dim, L=L)

    # --- main path: bf16 compute (MXU-native), aligned batch ---
    batch = 16
    x = jax.random.normal(kx, (batch, input_dim), jnp.float32)
    prepared_bf16 = prepare_mlp_readout_params(params)  # bf16 weights (default)
    out = jax.block_until_ready(mlp_readout_pallas(x, prepared_bf16))
    ref = mlp_readout_ref(x, params)
    assert out.shape == (batch, output_dim)
    assert jnp.allclose(out, ref, atol=5e-2, rtol=5e-2), "bf16 path mismatch vs reference"

    # --- f32 compute + ragged batch (exercises the masked tail block) ---
    batch2 = 20  # not a multiple of the 8-row sublane tile
    x2 = jax.random.normal(kx2, (batch2, input_dim), jnp.float32)
    prepared_f32 = prepare_mlp_readout_params(params, compute_dtype=jnp.float32)
    out2 = jax.block_until_ready(mlp_readout_pallas(x2, prepared_f32))
    ref2 = mlp_readout_ref(x2, params)
    assert out2.shape == (batch2, output_dim)
    assert jnp.allclose(out2, ref2, atol=1e-2, rtol=1e-2), "f32 path mismatch vs reference"

    print("KERNEL_OK")
</pallas_src>

<mosaic_0001>
module attributes {stable_mosaic.version = 11 : i64} {
  func.func @kernel(%arg0: i32, %arg1: memref<16x32xf32, #tpu.memory_space<vmem>>, %arg2: memref<32x16xbf16, #tpu.memory_space<vmem>>, %arg3: memref<1x16xf32, #tpu.memory_space<vmem>>, %arg4: memref<16x8xbf16, #tpu.memory_space<vmem>>, %arg5: memref<1x8xf32, #tpu.memory_space<vmem>>, %arg6: memref<8x8xbf16, #tpu.memory_space<vmem>>, %arg7: memref<1x8xf32, #tpu.memory_space<vmem>>, %arg8: memref<16x8xf32, #tpu.memory_space<vmem>>) attributes {dimension_semantics = [#tpu.dimension_semantics<parallel>], iteration_bounds = array<i64: 1>, scalar_prefetch = 0 : i64, scratch_operands = 0 : i64, tpu.core_type = #tpu.core_type<tc>, window_params = [{transform_indices = @transform_0, window_bounds = array<i64: 16, 32>}, {pipeline_mode = #tpu.pipeline_mode<synchronous>, transform_indices = @transform_1, window_bounds = array<i64: 32, 16>}, {pipeline_mode = #tpu.pipeline_mode<synchronous>, transform_indices = @transform_2, window_bounds = array<i64: 1, 16>}, {pipeline_mode = #tpu.pipeline_mode<synchronous>, transform_indices = @transform_3, window_bounds = array<i64: 16, 8>}, {pipeline_mode = #tpu.pipeline_mode<synchronous>, transform_indices = @transform_4, window_bounds = array<i64: 1, 8>}, {pipeline_mode = #tpu.pipeline_mode<synchronous>, transform_indices = @transform_5, window_bounds = array<i64: 8, 8>}, {pipeline_mode = #tpu.pipeline_mode<synchronous>, transform_indices = @transform_6, window_bounds = array<i64: 1, 8>}, {transform_indices = @transform_7, window_bounds = array<i64: 16, 8>}]} {
    %c0 = arith.constant 0 : index
    %c0_0 = arith.constant 0 : index
    %0 = vector.load %arg1[%c0, %c0_0] : memref<16x32xf32, #tpu.memory_space<vmem>>, vector<16x32xf32>
    %1 = arith.truncf %0 : vector<16x32xf32> to vector<16x32xbf16>
    %c0_1 = arith.constant 0 : index
    %c0_2 = arith.constant 0 : index
    %2 = vector.load %arg2[%c0_1, %c0_2] : memref<32x16xbf16, #tpu.memory_space<vmem>>, vector<32x16xbf16>
    %cst = arith.constant dense<0.000000e+00> : vector<16x16xf32>
    %3 = tpu.matmul %1, %2, %cst {dimension_numbers = #tpu.dot_dimension_numbers<[1], [0], [0], [1], [0, 0, 1, 1], [], []>} : vector<16x32xbf16>, vector<32x16xbf16>, vector<16x16xf32> -> vector<16x16xf32>
    %c0_3 = arith.constant 0 : index
    %c0_4 = arith.constant 0 : index
    %4 = vector.load %arg3[%c0_3, %c0_4] : memref<1x16xf32, #tpu.memory_space<vmem>>, vector<1x16xf32>
    %5 = vector.broadcast %4 : vector<1x16xf32> to vector<16x16xf32>
    %6 = arith.addf %3, %5 : vector<16x16xf32>
    %cst_5 = arith.constant 0.000000e+00 : f32
    %7 = vector.broadcast %cst_5 : f32 to vector<16x16xf32>
    %8 = arith.maximumf %6, %7 : vector<16x16xf32>
    %9 = arith.truncf %8 : vector<16x16xf32> to vector<16x16xbf16>
    %c0_6 = arith.constant 0 : index
    %c0_7 = arith.constant 0 : index
    %10 = vector.load %arg4[%c0_6, %c0_7] : memref<16x8xbf16, #tpu.memory_space<vmem>>, vector<16x8xbf16>
    %cst_8 = arith.constant dense<0.000000e+00> : vector<16x8xf32>
    %11 = tpu.matmul %9, %10, %cst_8 {dimension_numbers = #tpu.dot_dimension_numbers<[1], [0], [0], [1], [0, 0, 1, 1], [], []>} : vector<16x16xbf16>, vector<16x8xbf16>, vector<16x8xf32> -> vector<16x8xf32>
    %c0_9 = arith.constant 0 : index
    %c0_10 = arith.constant 0 : index
    %12 = vector.load %arg5[%c0_9, %c0_10] : memref<1x8xf32, #tpu.memory_space<vmem>>, vector<1x8xf32>
    %13 = vector.broadcast %12 : vector<1x8xf32> to vector<16x8xf32>
    %14 = arith.addf %11, %13 : vector<16x8xf32>
    %cst_11 = arith.constant 0.000000e+00 : f32
    %15 = vector.broadcast %cst_11 : f32 to vector<16x8xf32>
    %16 = arith.maximumf %14, %15 : vector<16x8xf32>
    %17 = arith.truncf %16 : vector<16x8xf32> to vector<16x8xbf16>
    %c0_12 = arith.constant 0 : index
    %c0_13 = arith.constant 0 : index
    %18 = vector.load %arg6[%c0_12, %c0_13] : memref<8x8xbf16, #tpu.memory_space<vmem>>, vector<8x8xbf16>
    %cst_14 = arith.constant dense<0.000000e+00> : vector<16x8xf32>
    %19 = tpu.matmul %17, %18, %cst_14 {dimension_numbers = #tpu.dot_dimension_numbers<[1], [0], [0], [1], [0, 0, 1, 1], [], []>} : vector<16x8xbf16>, vector<8x8xbf16>, vector<16x8xf32> -> vector<16x8xf32>
    %c0_15 = arith.constant 0 : index
    %c0_16 = arith.constant 0 : index
    %20 = vector.load %arg7[%c0_15, %c0_16] : memref<1x8xf32, #tpu.memory_space<vmem>>, vector<1x8xf32>
    %21 = vector.broadcast %20 : vector<1x8xf32> to vector<16x8xf32>
    %22 = arith.addf %19, %21 : vector<16x8xf32>
    %c0_17 = arith.constant 0 : index
    %c0_18 = arith.constant 0 : index
    %23 = vector.load %arg8[%c0_17, %c0_18] : memref<16x8xf32, #tpu.memory_space<vmem>>, vector<16x8xf32>
    tpu.vector_store %arg8[%c0_17, %c0_18], %22 {strides = array<i32>} : memref<16x8xf32, #tpu.memory_space<vmem>>, vector<16x8xf32>,
    return
  }
  func.func @transform_0(%arg0: i32) -> (i32, i32) {
    %c0_i32 = arith.constant 0 : i32
    %c0_i32_0 = arith.constant 0 : i32
    return %arg0, %c0_i32 : i32, i32
  }
  func.func @transform_1(%arg0: i32) -> (i32, i32) {
    %c0_i32 = arith.constant 0 : i32
    %c0_i32_0 = arith.constant 0 : i32
    %c0_i32_1 = arith.constant 0 : i32
    return %c0_i32, %c0_i32_0 : i32, i32
  }
  func.func @transform_2(%arg0: i32) -> (i32, i32) {
    %c0_i32 = arith.constant 0 : i32
    %c0_i32_0 = arith.constant 0 : i32
    %c0_i32_1 = arith.constant 0 : i32
    return %c0_i32, %c0_i32_0 : i32, i32
  }
  func.func @transform_3(%arg0: i32) -> (i32, i32) {
    %c0_i32 = arith.constant 0 : i32
    %c0_i32_0 = arith.constant 0 : i32
    %c0_i32_1 = arith.constant 0 : i32
    return %c0_i32, %c0_i32_0 : i32, i32
  }
  func.func @transform_4(%arg0: i32) -> (i32, i32) {
    %c0_i32 = arith.constant 0 : i32
    %c0_i32_0 = arith.constant 0 : i32
    %c0_i32_1 = arith.constant 0 : i32
    return %c0_i32, %c0_i32_0 : i32, i32
  }
  func.func @transform_5(%arg0: i32) -> (i32, i32) {
    %c0_i32 = arith.constant 0 : i32
    %c0_i32_0 = arith.constant 0 : i32
    %c0_i32_1 = arith.constant 0 : i32
    return %c0_i32, %c0_i32_0 : i32, i32
  }
  func.func @transform_6(%arg0: i32) -> (i32, i32) {
    %c0_i32 = arith.constant 0 : i32
    %c0_i32_0 = arith.constant 0 : i32
    %c0_i32_1 = arith.constant 0 : i32
    return %c0_i32, %c0_i32_0 : i32, i32
  }
  func.func @transform_7(%arg0: i32) -> (i32, i32) {
    %c0_i32 = arith.constant 0 : i32
    %c0_i32_0 = arith.constant 0 : i32
    return %arg0, %c0_i32 : i32, i32
  }
}

module attributes {stable_mosaic.version = 11 : i64} {
  func.func @kernel(%arg0: i32, %arg1: memref<16x32xf32, #tpu.memory_space<vmem>>, %arg2: memref<32x16xbf16, #tpu.memory_space<vmem>>, %arg3: memref<1x16xf32, #tpu.memory_space<vmem>>, %arg4: memref<16x8xbf16, #tpu.memory_space<vmem>>, %arg5: memref<1x8xf32, #tpu.memory_space<vmem>>, %arg6: memref<8x8xbf16, #tpu.memory_space<vmem>>, %arg7: memref<1x8xf32, #tpu.memory_space<vmem>>, %arg8: memref<16x8xf32, #tpu.memory_space<vmem>>) attributes {dimension_semantics = [#tpu.dimension_semantics<parallel>], iteration_bounds = array<i64: 1>, scalar_prefetch = 0 : i64, scratch_operands = 0 : i64, tpu.core_type = #tpu.core_type<tc>, window_params = [{transform_indices = @transform_0, window_bounds = array<i64: 16, 32>}, {pipeline_mode = #tpu.pipeline_mode<synchronous>, transform_indices = @transform_1, window_bounds = array<i64: 32, 16>}, {pipeline_mode = #tpu.pipeline_mode<synchronous>, transform_indices = @transform_2, window_bounds = array<i64: 1, 16>}, {pipeline_mode = #tpu.pipeline_mode<synchronous>, transform_indices = @transform_3, window_bounds = array<i64: 16, 8>}, {pipeline_mode = #tpu.pipeline_mode<synchronous>, transform_indices = @transform_4, window_bounds = array<i64: 1, 8>}, {pipeline_mode = #tpu.pipeline_mode<synchronous>, transform_indices = @transform_5, window_bounds = array<i64: 8, 8>}, {pipeline_mode = #tpu.pipeline_mode<synchronous>, transform_indices = @transform_6, window_bounds = array<i64: 1, 8>}, {transform_indices = @transform_7, window_bounds = array<i64: 16, 8>}]} {
    %c0 = arith.constant 0 : index
    %c0_0 = arith.constant 0 : index
    %0 = vector.load %arg1[%c0, %c0_0] : memref<16x32xf32, #tpu.memory_space<vmem>>, vector<16x32xf32>
    %1 = arith.truncf %0 : vector<16x32xf32> to vector<16x32xbf16>
    %c0_1 = arith.constant 0 : index
    %c0_2 = arith.constant 0 : index
    %2 = vector.load %arg2[%c0_1, %c0_2] : memref<32x16xbf16, #tpu.memory_space<vmem>>, vector<32x16xbf16>
    %cst = arith.constant dense<0.000000e+00> : vector<16x16xf32>
    %3 = tpu.matmul %1, %2, %cst {dimension_numbers = #tpu.dot_dimension_numbers<[1], [0], [0], [1], [0, 0, 1, 1], [], []>} : vector<16x32xbf16>, vector<32x16xbf16>, vector<16x16xf32> -> vector<16x16xf32>
    %c0_3 = arith.constant 0 : index
    %c0_4 = arith.constant 0 : index
    %4 = vector.load %arg3[%c0_3, %c0_4] : memref<1x16xf32, #tpu.memory_space<vmem>>, vector<1x16xf32>
    %5 = vector.broadcast %4 : vector<1x16xf32> to vector<16x16xf32>
    %6 = arith.addf %3, %5 : vector<16x16xf32>
    %cst_5 = arith.constant 0.000000e+00 : f32
    %7 = vector.broadcast %cst_5 : f32 to vector<16x16xf32>
    %8 = arith.maximumf %6, %7 : vector<16x16xf32>
    %9 = arith.truncf %8 : vector<16x16xf32> to vector<16x16xbf16>
    %c0_6 = arith.constant 0 : index
    %c0_7 = arith.constant 0 : index
    %10 = vector.load %arg4[%c0_6, %c0_7] : memref<16x8xbf16, #tpu.memory_space<vmem>>, vector<16x8xbf16>
    %cst_8 = arith.constant dense<0.000000e+00> : vector<16x8xf32>
    %11 = tpu.matmul %9, %10, %cst_8 {dimension_numbers = #tpu.dot_dimension_numbers<[1], [0], [0], [1], [0, 0, 1, 1], [], []>} : vector<16x16xbf16>, vector<16x8xbf16>, vector<16x8xf32> -> vector<16x8xf32>
    %c0_9 = arith.constant 0 : index
    %c0_10 = arith.constant 0 : index
    %12 = vector.load %arg5[%c0_9, %c0_10] : memref<1x8xf32, #tpu.memory_space<vmem>>, vector<1x8xf32>
    %13 = vector.broadcast %12 : vector<1x8xf32> to vector<16x8xf32>
    %14 = arith.addf %11, %13 : vector<16x8xf32>
    %cst_11 = arith.constant 0.000000e+00 : f32
    %15 = vector.broadcast %cst_11 : f32 to vector<16x8xf32>
    %16 = arith.maximumf %14, %15 : vector<16x8xf32>
    %17 = arith.truncf %16 : vector<16x8xf32> to vector<16x8xbf16>
    %c0_12 = arith.constant 0 : index
    %c0_13 = arith.constant 0 : index
    %18 = vector.load %arg6[%c0_12, %c0_13] : memref<8x8xbf16, #tpu.memory_space<vmem>>, vector<8x8xbf16>
    %cst_14 = arith.constant dense<0.000000e+00> : vector<16x8xf32>
    %19 = tpu.matmul %17, %18, %cst_14 {dimension_numbers = #tpu.dot_dimension_numbers<[1], [0], [0], [1], [0, 0, 1, 1], [], []>} : vector<16x8xbf16>, vector<8x8xbf16>, vector<16x8xf32> -> vector<16x8xf32>
    %c0_15 = arith.constant 0 : index
    %c0_16 = arith.constant 0 : index
    %20 = vector.load %arg7[%c0_15, %c0_16] : memref<1x8xf32, #tpu.memory_space<vmem>>, vector<1x8xf32>
    %21 = vector.broadcast %20 : vector<1x8xf32> to vector<16x8xf32>
    %22 = arith.addf %19, %21 : vector<16x8xf32>
    %c0_17 = arith.constant 0 : index
    %c0_18 = arith.constant 0 : index
    %23 = vector.load %arg8[%c0_17, %c0_18] : memref<16x8xf32, #tpu.memory_space<vmem>>, vector<16x8xf32>
    tpu.vector_store %arg8[%c0_17, %c0_18], %22 {strides = array<i32>} : memref<16x8xf32, #tpu.memory_space<vmem>>, vector<16x8xf32>,
    return
  }
  func.func @transform_0(%arg0: i32) -> (i32, i32) {
    %c0_i32 = arith.constant 0 : i32
    %c0_i32_0 = arith.constant 0 : i32
    return %arg0, %c0_i32 : i32, i32
  }
  func.func @transform_1(%arg0: i32) -> (i32, i32) {
    %c0_i32 = arith.constant 0 : i32
    %c0_i32_0 = arith.constant 0 : i32
    %c0_i32_1 = arith.constant 0 : i32
    return %c0_i32, %c0_i32_0 : i32, i32
  }
  func.func @transform_2(%arg0: i32) -> (i32, i32) {
    %c0_i32 = arith.constant 0 : i32
    %c0_i32_0 = arith.constant 0 : i32
    %c0_i32_1 = arith.constant 0 : i32
    return %c0_i32, %c0_i32_0 : i32, i32
  }
  func.func @transform_3(%arg0: i32) -> (i32, i32) {
    %c0_i32 = arith.constant 0 : i32
    %c0_i32_0 = arith.constant 0 : i32
    %c0_i32_1 = arith.constant 0 : i32
    return %c0_i32, %c0_i32_0 : i32, i32
  }
  func.func @transform_4(%arg0: i32) -> (i32, i32) {
    %c0_i32 = arith.constant 0 : i32
    %c0_i32_0 = arith.constant 0 : i32
    %c0_i32_1 = arith.constant 0 : i32
    return %c0_i32, %c0_i32_0 : i32, i32
  }
  func.func @transform_5(%arg0: i32) -> (i32, i32) {
    %c0_i32 = arith.constant 0 : i32
    %c0_i32_0 = arith.constant 0 : i32
    %c0_i32_1 = arith.constant 0 : i32
    return %c0_i32, %c0_i32_0 : i32, i32
  }
  func.func @transform_6(%arg0: i32) -> (i32, i32) {
    %c0_i32 = arith.constant 0 : i32
    %c0_i32_0 = arith.constant 0 : i32
    %c0_i32_1 = arith.constant 0 : i32
    return %c0_i32, %c0_i32_0 : i32, i32
  }
  func.func @transform_7(%arg0: i32) -> (i32, i32) {
    %c0_i32 = arith.constant 0 : i32
    %c0_i32_0 = arith.constant 0 : i32
    return %arg0, %c0_i32 : i32, i32
  }
}

</mosaic_0001>

<llo_original>
// kernel: tpu_custom_call.1
$region0: #{tpu_custom_call.1}
  #allocation0 [shape = 'u32[]', space=smem, size = 0x4, offset = 0x4, fixed_abs, tag = 'smem constant byte address 0x4 - core index']
  #allocation1 [shape = 'u32[72,128]{1,0:T(1,128)}', space=vmem, size = 0x9000, scoped, tag = 'internal scratch']
  %s0 = inlined_call_operand.vmem [shape: f32[16,32], index: 0, kind: input, shape index: {}]
  %s1 = inlined_call_operand.vmem [shape: bf16[32,16], index: 1, kind: input, shape index: {}]
  %s2 = inlined_call_operand.vmem [shape: f32[1,16], index: 2, kind: input, shape index: {}]
  %s3 = inlined_call_operand.vmem [shape: bf16[16,8], index: 3, kind: input, shape index: {}]
  %s4 = inlined_call_operand.vmem [shape: f32[1,8], index: 4, kind: input, shape index: {}]
  %s5 = inlined_call_operand.vmem [shape: bf16[8,8], index: 5, kind: input, shape index: {}]
  %s6 = inlined_call_operand.vmem [shape: f32[1,8], index: 6, kind: input, shape index: {}]
  %s7 = inlined_call_operand.vmem [shape: f32[16,8], index: 7, kind: output, shape index: {}]
  %s8 = sld [smem:[#allocation0]]
  $region38: #{tpu_custom_call.1} parent=0
    _
  %s10 = ssub.s32 1, %s8
  %s11 = scalar_select 0, %s10, %s8
  // Predicated region
  $region2: #{tpu_custom_call.1} parent=0 // pred_check
    _
  $region3: #{tpu_custom_call.1} parent=0 // pred_check_branch
    %13 = sbr.rel (0) target = $region5
  $region4: #{tpu_custom_call.1} parent=0 // pred_region
    _
  $region5: #{tpu_custom_call.1} parent=0 // pred_fallthru
    _
  // Predicated region
  $region6: #{tpu_custom_call.1} parent=0 // pred_check
    _
  $region7: #{tpu_custom_call.1} parent=0 // pred_check_branch
    %15 = sbr.rel (0) target = $region9
  $region8: #{tpu_custom_call.1} parent=0 // pred_region
    _
  $region9: #{tpu_custom_call.1} parent=0 // pred_fallthru
    _
  // Predicated region
  $region10: #{tpu_custom_call.1} parent=0 // pred_check
    _
  $region11: #{tpu_custom_call.1} parent=0 // pred_check_branch
    %17 = sbr.rel (0) target = $region13
  $region12: #{tpu_custom_call.1} parent=0 // pred_region
    _
  $region13: #{tpu_custom_call.1} parent=0 // pred_fallthru
    _
  // Predicated region
  $region14: #{tpu_custom_call.1} parent=0 // pred_check
    _
  $region15: #{tpu_custom_call.1} parent=0 // pred_check_branch
    %19 = sbr.rel (0) target = $region17
  $region16: #{tpu_custom_call.1} parent=0 // pred_region
    _
  $region17: #{tpu_custom_call.1} parent=0 // pred_fallthru
    _
  // Predicated region
  $region18: #{tpu_custom_call.1} parent=0 // pred_check
    _
  $region19: #{tpu_custom_call.1} parent=0 // pred_check_branch
    %21 = sbr.rel (0) target = $region21
  $region20: #{tpu_custom_call.1} parent=0 // pred_region
    _
  $region21: #{tpu_custom_call.1} parent=0 // pred_fallthru
    _
  // Predicated region
  $region22: #{tpu_custom_call.1} parent=0 // pred_check
    _
  $region23: #{tpu_custom_call.1} parent=0 // pred_check_branch
    %23 = sbr.rel (0) target = $region25
  $region24: #{tpu_custom_call.1} parent=0 // pred_region
    _
  $region25: #{tpu_custom_call.1} parent=0 // pred_fallthru
    _
  // Predicated region
  $region26: #{tpu_custom_call.1} parent=0 // pred_check
    _
  $region27: #{tpu_custom_call.1} parent=0 // pred_check_branch
    %25 = sbr.rel (0) target = $region29
  $region28: #{tpu_custom_call.1} parent=0 // pred_region
    _
  $region29: #{tpu_custom_call.1} parent=0 // pred_fallthru
    _
  %v27 = vld [vmem:[%s0] sm:$0xff]
  %v28 = vld [vmem:[%s0 + $0x8] sm:$0xff]
  %v29 = vpack.c.bf16 %v28, %v27
  %v30 = vld [vmem:[%s1] sm:$0xf]
  %v31 = vld [vmem:[%s1 + $0x4] sm:$0xf]
  %v32 = vld [vmem:[%s1 + $0x8] sm:$0xf]
  %v33 = vld [vmem:[%s1 + $0xc] sm:$0xf]
  %v34 = vld [vmem:[%s2] sm:$0x1]
  %v36 = vperm.slane %v34, 0
  %v42 = vunpack.c.l.b16 %v30
  %v43 = vunpack.c.l.b16 %v31
  %v44 = vunpack.c.l.b16 %v32
  %v45 = vunpack.c.l.b16 %v33
  %v46 = vpack.c.b16 %v43, %v42
  %v47 = vpack.c.b16 %v45, %v44
  %vm50 = vcmask 261120
  %v52 = vsel %vm50, %v29, 0
  %54 = vmatpush.bf16.msra.mxu0 0
  %55 = vmatpush.bf16.msra.mxu0 0
  %56 = vmatpush.bf16.msra.mxu0 0
  %57 = vmatpush.bf16.msra.mxu0 0
  %58 = vmatpush.bf16.msra.mxu0 0
  %59 = vmatpush.bf16.msra.mxu0 0
  %60 = vmatpush.bf16.msra.mxu0 %v47
  %61 = vmatpush.bf16.msra.mxu0 %v46
  %62 = vmatmul.bf16.gmra.mxu0 %v52
  %v63 = vpop.f32.mrf.mxu0
  %v64 = vadd.f32 %v36, %v63
  %v65 = vpop.f32.mrf.mxu0
  %v66 = vadd.f32 %v36, %v65
  %67 = vdwg.mxu0
  %v68 = vmax.f32 %v64, 0.0
  %v69 = vmax.f32 %v66, 0.0
  %v70 = vpack.c.bf16 %v69, %v68
  %v71 = vld [vmem:[%s3] sm:$0xf]
  %v72 = vld [vmem:[%s3 + $0x4] sm:$0xf]
  %v73 = vld [vmem:[%s4] sm:$0x1]
  %v75 = vperm.slane %v73, 0
  %v79 = vunpack.c.l.b16 %v71
  %v80 = vunpack.c.l.b16 %v72
  %v81 = vpack.c.b16 %v80, %v79
  %vm83 = vcmask 130048
  %v85 = vsel %vm83, %v70, 0
  %87 = vmatpush.bf16.msra.mxu0 0
  %88 = vmatpush.bf16.msra.mxu0 0
  %89 = vmatpush.bf16.msra.mxu0 0
  %90 = vmatpush.bf16.msra.mxu0 0
  %91 = vmatpush.bf16.msra.mxu0 0
  %92 = vmatpush.bf16.msra.mxu0 0
  %93 = vmatpush.bf16.msra.mxu0 0
  %94 = vmatpush.bf16.msra.mxu0 %v81
  %95 = vmatmul.bf16.gmra.mxu0 %v85
  %v96 = vpop.f32.mrf.mxu0
  %v97 = vadd.f32 %v75, %v96
  %v98 = vpop.f32.mrf.mxu0
  %v99 = vadd.f32 %v75, %v98
  %100 = vdwg.mxu0
  %v101 = vmax.f32 %v97, 0.0
  %v102 = vmax.f32 %v99, 0.0
  %v103 = vpack.c.bf16 %v102, %v101
  %v104 = vld [vmem:[%s5] sm:$0xf]
  %v105 = vld [vmem:[%s6] sm:$0x1]
  %v107 = vperm.slane %v105, 0
  %vm109 = vcmask 64512
  %v111 = vsel %vm109, %v103, 0
  %vm113 = vcmask 1043456
  %v115 = vsel %vm113, %v104, 0
  %117 = vmatpush.bf16.msra.mxu0 0
  %118 = vmatpush.bf16.msra.mxu0 0
  %119 = vmatpush.bf16.msra.mxu0 0
  %120 = vmatpush.bf16.msra.mxu0 0
  %121 = vmatpush.bf16.msra.mxu0 0
  %122 = vmatpush.bf16.msra.mxu0 0
  %123 = vmatpush.bf16.msra.mxu0 0
  %124 = vmatpush.bf16.msra.mxu0 %v115
  %125 = vmatmul.bf16.gmra.mxu0 %v111
  %v126 = vpop.f32.mrf.mxu0
  %v127 = vadd.f32 %v107, %v126
  %v128 = vpop.f32.mrf.mxu0
  %v129 = vadd.f32 %v107, %v128
  %130 = vdwg.mxu0
  %131 = vst.msk [vmem:[%s7] sm:$0xff] %vm109, %v127
  %132 = vst.msk [vmem:[%s7 + $0x8] sm:$0xff] %vm109, %v129
  // Predicated region
  $region30: #{tpu_custom_call.1} parent=0 // pred_check
    _
  $region31: #{tpu_custom_call.1} parent=0 // pred_check_branch
    %134 = sbr.rel (0) target = $region33
  $region32: #{tpu_custom_call.1} parent=0 // pred_region
    _
  $region33: #{tpu_custom_call.1} parent=0 // pred_fallthru
    _
  // Predicated region
  $region34: #{tpu_custom_call.1} parent=0 // pred_check
    _
  $region35: #{tpu_custom_call.1} parent=0 // pred_check_branch
    %136 = sbr.rel (0) target = $region37
  $region36: #{tpu_custom_call.1} parent=0 // pred_region
    _
  $region37: #{tpu_custom_call.1} parent=0 // pred_fallthru
    _

// kernel: tpu_custom_call.1
$region0: #{tpu_custom_call.1}
  #allocation0 [shape = 'u32[]', space=smem, size = 0x4, offset = 0x4, fixed_abs, tag = 'smem constant byte address 0x4 - core index']
  #allocation1 [shape = 'u32[72,128]{1,0:T(1,128)}', space=vmem, size = 0x9000, scoped, tag = 'internal scratch']
  %s0 = inlined_call_operand.vmem [shape: f32[16,32], index: 0, kind: input, shape index: {}]
  %s1 = inlined_call_operand.vmem [shape: bf16[32,16], index: 1, kind: input, shape index: {}]
  %s2 = inlined_call_operand.vmem [shape: f32[1,16], index: 2, kind: input, shape index: {}]
  %s3 = inlined_call_operand.vmem [shape: bf16[16,8], index: 3, kind: input, shape index: {}]
  %s4 = inlined_call_operand.vmem [shape: f32[1,8], index: 4, kind: input, shape index: {}]
  %s5 = inlined_call_operand.vmem [shape: bf16[8,8], index: 5, kind: input, shape index: {}]
  %s6 = inlined_call_operand.vmem [shape: f32[1,8], index: 6, kind: input, shape index: {}]
  %s7 = inlined_call_operand.vmem [shape: f32[16,8], index: 7, kind: output, shape index: {}]
  %s8 = sld [smem:[#allocation0]]
  $region38: #{tpu_custom_call.1} parent=0
    _
  %s10 = ssub.s32 1, %s8
  %s11 = scalar_select 0, %s10, %s8
  // Predicated region
  $region2: #{tpu_custom_call.1} parent=0 // pred_check
    _
  $region3: #{tpu_custom_call.1} parent=0 // pred_check_branch
    %13 = sbr.rel (0) target = $region5
  $region4: #{tpu_custom_call.1} parent=0 // pred_region
    _
  $region5: #{tpu_custom_call.1} parent=0 // pred_fallthru
    _
  // Predicated region
  $region6: #{tpu_custom_call.1} parent=0 // pred_check
    _
  $region7: #{tpu_custom_call.1} parent=0 // pred_check_branch
    %15 = sbr.rel (0) target = $region9
  $region8: #{tpu_custom_call.1} parent=0 // pred_region
    _
  $region9: #{tpu_custom_call.1} parent=0 // pred_fallthru
    _
  // Predicated region
  $region10: #{tpu_custom_call.1} parent=0 // pred_check
    _
  $region11: #{tpu_custom_call.1} parent=0 // pred_check_branch
    %17 = sbr.rel (0) target = $region13
  $region12: #{tpu_custom_call.1} parent=0 // pred_region
    _
  $region13: #{tpu_custom_call.1} parent=0 // pred_fallthru
    _
  // Predicated region
  $region14: #{tpu_custom_call.1} parent=0 // pred_check
    _
  $region15: #{tpu_custom_call.1} parent=0 // pred_check_branch
    %19 = sbr.rel (0) target = $region17
  $region16: #{tpu_custom_call.1} parent=0 // pred_region
    _
  $region17: #{tpu_custom_call.1} parent=0 // pred_fallthru
    _
  // Predicated region
  $region18: #{tpu_custom_call.1} parent=0 // pred_check
    _
  $region19: #{tpu_custom_call.1} parent=0 // pred_check_branch
    %21 = sbr.rel (0) target = $region21
  $region20: #{tpu_custom_call.1} parent=0 // pred_region
    _
  $region21: #{tpu_custom_call.1} parent=0 // pred_fallthru
    _
  // Predicated region
  $region22: #{tpu_custom_call.1} parent=0 // pred_check
    _
  $region23: #{tpu_custom_call.1} parent=0 // pred_check_branch
    %23 = sbr.rel (0) target = $region25
  $region24: #{tpu_custom_call.1} parent=0 // pred_region
    _
  $region25: #{tpu_custom_call.1} parent=0 // pred_fallthru
    _
  // Predicated region
  $region26: #{tpu_custom_call.1} parent=0 // pred_check
    _
  $region27: #{tpu_custom_call.1} parent=0 // pred_check_branch
    %25 = sbr.rel (0) target = $region29
  $region28: #{tpu_custom_call.1} parent=0 // pred_region
    _
  $region29: #{tpu_custom_call.1} parent=0 // pred_fallthru
    _
  %v27 = vld [vmem:[%s0] sm:$0xff]
  %v28 = vld [vmem:[%s0 + $0x8] sm:$0xff]
  %v29 = vpack.c.bf16 %v28, %v27
  %v30 = vld [vmem:[%s1] sm:$0xf]
  %v31 = vld [vmem:[%s1 + $0x4] sm:$0xf]
  %v32 = vld [vmem:[%s1 + $0x8] sm:$0xf]
  %v33 = vld [vmem:[%s1 + $0xc] sm:$0xf]
  %v34 = vld [vmem:[%s2] sm:$0x1]
  %v36 = vperm.slane %v34, 0
  %v42 = vunpack.c.l.b16 %v30
  %v43 = vunpack.c.l.b16 %v31
  %v44 = vunpack.c.l.b16 %v32
  %v45 = vunpack.c.l.b16 %v33
  %v46 = vpack.c.b16 %v43, %v42
  %v47 = vpack.c.b16 %v45, %v44
  %vm50 = vcmask 261120
  %v52 = vsel %vm50, %v29, 0
  %54 = vmatpush.bf16.msra.mxu0 0
  %55 = vmatpush.bf16.msra.mxu0 0
  %56 = vmatpush.bf16.msra.mxu0 0
  %57 = vmatpush.bf16.msra.mxu0 0
  %58 = vmatpush.bf16.msra.mxu0 0
  %59 = vmatpush.bf16.msra.mxu0 0
  %60 = vmatpush.bf16.msra.mxu0 %v47
  %61 = vmatpush.bf16.msra.mxu0 %v46
  %62 = vmatmul.bf16.gmra.mxu0 %v52
  %v63 = vpop.f32.mrf.mxu0
  %v64 = vadd.f32 %v36, %v63
  %v65 = vpop.f32.mrf.mxu0
  %v66 = vadd.f32 %v36, %v65
  %67 = vdwg.mxu0
  %v68 = vmax.f32 %v64, 0.0
  %v69 = vmax.f32 %v66, 0.0
  %v70 = vpack.c.bf16 %v69, %v68
  %v71 = vld [vmem:[%s3] sm:$0xf]
  %v72 = vld [vmem:[%s3 + $0x4] sm:$0xf]
  %v73 = vld [vmem:[%s4] sm:$0x1]
  %v75 = vperm.slane %v73, 0
  %v79 = vunpack.c.l.b16 %v71
  %v80 = vunpack.c.l.b16 %v72
  %v81 = vpack.c.b16 %v80, %v79
  %vm83 = vcmask 130048
  %v85 = vsel %vm83, %v70, 0
  %87 = vmatpush.bf16.msra.mxu0 0
  %88 = vmatpush.bf16.msra.mxu0 0
  %89 = vmatpush.bf16.msra.mxu0 0
  %90 = vmatpush.bf16.msra.mxu0 0
  %91 = vmatpush.bf16.msra.mxu0 0
  %92 = vmatpush.bf16.msra.mxu0 0
  %93 = vmatpush.bf16.msra.mxu0 0
  %94 = vmatpush.bf16.msra.mxu0 %v81
  %95 = vmatmul.bf16.gmra.mxu0 %v85
  %v96 = vpop.f32.mrf.mxu0
  %v97 = vadd.f32 %v75, %v96
  %v98 = vpop.f32.mrf.mxu0
  %v99 = vadd.f32 %v75, %v98
  %100 = vdwg.mxu0
  %v101 = vmax.f32 %v97, 0.0
  %v102 = vmax.f32 %v99, 0.0
  %v103 = vpack.c.bf16 %v102, %v101
  %v104 = vld [vmem:[%s5] sm:$0xf]
  %v105 = vld [vmem:[%s6] sm:$0x1]
  %v107 = vperm.slane %v105, 0
  %vm109 = vcmask 64512
  %v111 = vsel %vm109, %v103, 0
  %vm113 = vcmask 1043456
  %v115 = vsel %vm113, %v104, 0
  %117 = vmatpush.bf16.msra.mxu0 0
  %118 = vmatpush.bf16.msra.mxu0 0
  %119 = vmatpush.bf16.msra.mxu0 0
  %120 = vmatpush.bf16.msra.mxu0 0
  %121 = vmatpush.bf16.msra.mxu0 0
  %122 = vmatpush.bf16.msra.mxu0 0
  %123 = vmatpush.bf16.msra.mxu0 0
  %124 = vmatpush.bf16.msra.mxu0 %v115
  %125 = vmatmul.bf16.gmra.mxu0 %v111
  %v126 = vpop.f32.mrf.mxu0
  %v127 = vadd.f32 %v107, %v126
  %v128 = vpop.f32.mrf.mxu0
  %v129 = vadd.f32 %v107, %v128
  %130 = vdwg.mxu0
  %131 = vst.msk [vmem:[%s7] sm:$0xff] %vm109, %v127
  %132 = vst.msk [vmem:[%s7 + $0x8] sm:$0xff] %vm109, %v129
  // Predicated region
  $region30: #{tpu_custom_call.1} parent=0 // pred_check
    _
  $region31: #{tpu_custom_call.1} parent=0 // pred_check_branch
    %134 = sbr.rel (0) target = $region33
  $region32: #{tpu_custom_call.1} parent=0 // pred_region
    _
  $region33: #{tpu_custom_call.1} parent=0 // pred_fallthru
    _
  // Predicated region
  $region34: #{tpu_custom_call.1} parent=0 // pred_check
    _
  $region35: #{tpu_custom_call.1} parent=0 // pred_check_branch
    %136 = sbr.rel (0) target = $region37
  $region36: #{tpu_custom_call.1} parent=0 // pred_region
    _
  $region37: #{tpu_custom_call.1} parent=0 // pred_fallthru
    _

</llo_original>
